<compile_context>
chip_gen: v5e
topology: v5e:2x2
jax: 0.10.0
libtpu: 0.0.40
codegen_flags: <defaults>
</compile_context>

<pallas_src>
import jax
import jax.numpy as jnp
from jax.experimental import pallas as pl
from jax.experimental.pallas import tpu as pltpu

HIDDEN_SIZE = 32
LANE = 128
NEG_BIAS = jnp.float32(-1e30)   # forces softmax ~0 on padded action columns


def _round_up(x, m):
    return ((x + m - 1) // m) * m


def actor_kernel(s_ref, w1_ref, b1_ref, w2_ref, b2_ref, w3_ref, b3_ref, o_ref):
    # bf16 operands feed the MXU; accumulation + elementwise math in f32.
    x = s_ref[...]                                                   # (TM, S) bf16

    h1 = jnp.dot(x, w1_ref[...], preferred_element_type=jnp.float32) + b1_ref[...]
    h1 = jnp.maximum(h1, 0.0)

    h2 = jnp.dot(h1.astype(jnp.bfloat16), w2_ref[...],
                 preferred_element_type=jnp.float32) + b2_ref[...]
    h2 = jnp.maximum(h2, 0.0)

    # fc3 into a lane-dense (TM, A_pad) slab; padded cols carry bias = -1e30
    logits = jnp.dot(h2.astype(jnp.bfloat16), w3_ref[...],
                     preferred_element_type=jnp.float32) + b3_ref[...]

    # numerically stable softmax over the last axis; exp() of padded cols
    # underflows to exactly 0, so normalization only covers the real actions.
    m = jnp.max(logits, axis=-1, keepdims=True)
    e = jnp.exp(logits - m)
    denom = jnp.sum(e, axis=-1, keepdims=True)
    o_ref[...] = (e * pl.reciprocal(denom, approx=True)).astype(o_ref.dtype)


def actor_forward(s, params, *, block_rows=256):
    """s: (batch, state_dim) float32. Returns (batch, action_dim) float32 probs."""
    w1, b1, w2, b2, w3, b3 = (params["w1"], params["b1"],
                              params["w2"], params["b2"],
                              params["w3"], params["b3"])
    batch, state_dim = s.shape
    action_dim = w3.shape[1]

    # --- tiling / padding (keeps every per-step tile tiny: well under scoped
    #     VMEM even on v7x's 32 MiB default) ---
    tm = min(block_rows, _round_up(batch, 16))      # 16: bf16 sublane packing
    padded_batch = _round_up(batch, tm)
    a_pad = _round_up(max(action_dim, LANE), LANE)  # lane-dense output slab

    s_p = jnp.zeros((padded_batch, state_dim), jnp.bfloat16).at[:batch].set(
        s.astype(jnp.bfloat16))
    w1_b = w1.astype(jnp.bfloat16)
    w2_b = w2.astype(jnp.bfloat16)
    b1_f = b1.astype(jnp.float32)
    b2_f = b2.astype(jnp.float32)
    w3_p = jnp.zeros((HIDDEN_SIZE, a_pad), jnp.bfloat16).at[:, :action_dim].set(
        w3.astype(jnp.bfloat16))
    b3_p = jnp.full((1, a_pad), NEG_BIAS, jnp.float32).at[:, :action_dim].set(
        b3.astype(jnp.float32))

    const2d = lambda i: (0, 0)  # weights/biases: same block every step -> resident

    out = pl.pallas_call(
        actor_kernel,
        out_shape=jax.ShapeDtypeStruct((padded_batch, a_pad), jnp.float32),
        grid=(padded_batch // tm,),
        in_specs=[
            pl.BlockSpec((tm, state_dim), lambda i: (i, 0)),        # s tile (pipelined)
            pl.BlockSpec((state_dim, HIDDEN_SIZE), const2d),        # w1
            pl.BlockSpec((1, HIDDEN_SIZE), const2d),                # b1
            pl.BlockSpec((HIDDEN_SIZE, HIDDEN_SIZE), const2d),      # w2
            pl.BlockSpec((1, HIDDEN_SIZE), const2d),                # b2
            pl.BlockSpec((HIDDEN_SIZE, a_pad), const2d),            # w3 (lane-padded)
            pl.BlockSpec((1, a_pad), const2d),                      # b3 (lane-padded)
        ],
        out_specs=pl.BlockSpec((tm, a_pad), lambda i: (i, 0)),
        compiler_params=pltpu.CompilerParams(
            dimension_semantics=("parallel",)),                     # megacore on v7x
    )(s_p, w1_b, b1_f, w2_b, b2_f, w3_p, b3_p)

    return out[:batch, :action_dim]


def init_actor_params(key, state_dim, action_dim):
    """Deterministic init mimicking PyTorch Linear default (uniform +/- 1/sqrt(fan_in))."""
    ks = jax.random.split(key, 6)

    def lin(kw, kb, fan_in, fan_out):
        bound = 1.0 / jnp.sqrt(fan_in)
        w = jax.random.uniform(kw, (fan_in, fan_out), jnp.float32, -bound, bound)
        b = jax.random.uniform(kb, (1, fan_out), jnp.float32, -bound, bound)
        return w, b

    w1, b1 = lin(ks[0], ks[1], state_dim, HIDDEN_SIZE)
    w2, b2 = lin(ks[2], ks[3], HIDDEN_SIZE, HIDDEN_SIZE)
    w3, b3 = lin(ks[4], ks[5], HIDDEN_SIZE, action_dim)
    return {"w1": w1, "b1": b1, "w2": w2, "b2": b2, "w3": w3, "b3": b3}


if __name__ == "__main__":
    key = jax.random.PRNGKey(0)
    k_param, k_input = jax.random.split(key)

    batch, state_dim, action_dim = 8, 16, 4
    params = init_actor_params(k_param, state_dim, action_dim)
    s = jax.random.normal(k_input, (batch, state_dim), jnp.float32)

    probs = actor_forward(s, params)
    jax.block_until_ready(probs)

    # reference check in plain JAX (f32)
    def ref(s, p):
        h1 = jax.nn.relu(s @ p["w1"] + p["b1"])
        h2 = jax.nn.relu(h1 @ p["w2"] + p["b2"])
        return jax.nn.softmax(h2 @ p["w3"] + p["b3"], axis=1)

    expected = ref(s, params)
    assert probs.shape == (batch, action_dim)
    # tolerances loosened for bf16 matmuls + approx reciprocal
    assert jnp.allclose(probs, expected, atol=2e-2, rtol=2e-2)
    assert jnp.allclose(jnp.sum(probs, axis=1), 1.0, atol=2e-3)

    print("KERNEL_OK")
</pallas_src>

<mosaic_0001>
module attributes {stable_mosaic.version = 11 : i64} {
  func.func @actor_kernel(%arg0: i32, %arg1: memref<16x16xbf16, #tpu.memory_space<vmem>>, %arg2: memref<16x32xbf16, #tpu.memory_space<vmem>>, %arg3: memref<1x32xf32, #tpu.memory_space<vmem>>, %arg4: memref<32x32xbf16, #tpu.memory_space<vmem>>, %arg5: memref<1x32xf32, #tpu.memory_space<vmem>>, %arg6: memref<32x128xbf16, #tpu.memory_space<vmem>>, %arg7: memref<1x128xf32, #tpu.memory_space<vmem>>, %arg8: memref<16x128xf32, #tpu.memory_space<vmem>>) attributes {dimension_semantics = [#tpu.dimension_semantics<parallel>], iteration_bounds = array<i64: 1>, scalar_prefetch = 0 : i64, scratch_operands = 0 : i64, tpu.core_type = #tpu.core_type<tc>, window_params = [{transform_indices = @transform_0, window_bounds = array<i64: 16, 16>}, {pipeline_mode = #tpu.pipeline_mode<synchronous>, transform_indices = @transform_1, window_bounds = array<i64: 16, 32>}, {pipeline_mode = #tpu.pipeline_mode<synchronous>, transform_indices = @transform_2, window_bounds = array<i64: 1, 32>}, {pipeline_mode = #tpu.pipeline_mode<synchronous>, transform_indices = @transform_3, window_bounds = array<i64: 32, 32>}, {pipeline_mode = #tpu.pipeline_mode<synchronous>, transform_indices = @transform_4, window_bounds = array<i64: 1, 32>}, {pipeline_mode = #tpu.pipeline_mode<synchronous>, transform_indices = @transform_5, window_bounds = array<i64: 32, 128>}, {pipeline_mode = #tpu.pipeline_mode<synchronous>, transform_indices = @transform_6, window_bounds = array<i64: 1, 128>}, {transform_indices = @transform_7, window_bounds = array<i64: 16, 128>}]} {
    %c0 = arith.constant 0 : index
    %c0_0 = arith.constant 0 : index
    %0 = vector.load %arg1[%c0, %c0_0] : memref<16x16xbf16, #tpu.memory_space<vmem>>, vector<16x16xbf16>
    %c0_1 = arith.constant 0 : index
    %c0_2 = arith.constant 0 : index
    %1 = vector.load %arg2[%c0_1, %c0_2] : memref<16x32xbf16, #tpu.memory_space<vmem>>, vector<16x32xbf16>
    %cst = arith.constant dense<0.000000e+00> : vector<16x32xf32>
    %2 = tpu.matmul %0, %1, %cst {dimension_numbers = #tpu.dot_dimension_numbers<[1], [0], [0], [1], [0, 0, 1, 1], [], []>} : vector<16x16xbf16>, vector<16x32xbf16>, vector<16x32xf32> -> vector<16x32xf32>
    %c0_3 = arith.constant 0 : index
    %c0_4 = arith.constant 0 : index
    %3 = vector.load %arg3[%c0_3, %c0_4] : memref<1x32xf32, #tpu.memory_space<vmem>>, vector<1x32xf32>
    %4 = vector.broadcast %3 : vector<1x32xf32> to vector<16x32xf32>
    %5 = arith.addf %2, %4 : vector<16x32xf32>
    %cst_5 = arith.constant 0.000000e+00 : f32
    %6 = vector.broadcast %cst_5 : f32 to vector<16x32xf32>
    %7 = arith.maximumf %5, %6 : vector<16x32xf32>
    %8 = arith.truncf %7 : vector<16x32xf32> to vector<16x32xbf16>
    %c0_6 = arith.constant 0 : index
    %c0_7 = arith.constant 0 : index
    %9 = vector.load %arg4[%c0_6, %c0_7] : memref<32x32xbf16, #tpu.memory_space<vmem>>, vector<32x32xbf16>
    %cst_8 = arith.constant dense<0.000000e+00> : vector<16x32xf32>
    %10 = tpu.matmul %8, %9, %cst_8 {dimension_numbers = #tpu.dot_dimension_numbers<[1], [0], [0], [1], [0, 0, 1, 1], [], []>} : vector<16x32xbf16>, vector<32x32xbf16>, vector<16x32xf32> -> vector<16x32xf32>
    %c0_9 = arith.constant 0 : index
    %c0_10 = arith.constant 0 : index
    %11 = vector.load %arg5[%c0_9, %c0_10] : memref<1x32xf32, #tpu.memory_space<vmem>>, vector<1x32xf32>
    %12 = vector.broadcast %11 : vector<1x32xf32> to vector<16x32xf32>
    %13 = arith.addf %10, %12 : vector<16x32xf32>
    %cst_11 = arith.constant 0.000000e+00 : f32
    %14 = vector.broadcast %cst_11 : f32 to vector<16x32xf32>
    %15 = arith.maximumf %13, %14 : vector<16x32xf32>
    %16 = arith.truncf %15 : vector<16x32xf32> to vector<16x32xbf16>
    %c0_12 = arith.constant 0 : index
    %c0_13 = arith.constant 0 : index
    %17 = vector.load %arg6[%c0_12, %c0_13] : memref<32x128xbf16, #tpu.memory_space<vmem>>, vector<32x128xbf16>
    %cst_14 = arith.constant dense<0.000000e+00> : vector<16x128xf32>
    %18 = tpu.matmul %16, %17, %cst_14 {dimension_numbers = #tpu.dot_dimension_numbers<[1], [0], [0], [1], [0, 0, 1, 1], [], []>} : vector<16x32xbf16>, vector<32x128xbf16>, vector<16x128xf32> -> vector<16x128xf32>
    %c0_15 = arith.constant 0 : index
    %c0_16 = arith.constant 0 : index
    %19 = vector.load %arg7[%c0_15, %c0_16] : memref<1x128xf32, #tpu.memory_space<vmem>>, vector<1x128xf32>
    %20 = vector.broadcast %19 : vector<1x128xf32> to vector<16x128xf32>
    %21 = arith.addf %18, %20 : vector<16x128xf32>
    %cst_17 = arith.constant dense<0xFF800000> : vector<16xf32>
    %22 = vector.multi_reduction <maximumf>, %21, %cst_17 [1] : vector<16x128xf32> to vector<16xf32>
    %23 = vector.shape_cast %22 : vector<16xf32> to vector<16x1xf32>
    %24 = vector.broadcast %23 : vector<16x1xf32> to vector<16x128xf32>
    %25 = arith.subf %21, %24 : vector<16x128xf32>
    %26 = math.exp %25 : vector<16x128xf32>
    %cst_18 = arith.constant dense<0.000000e+00> : vector<16xf32>
    %27 = vector.multi_reduction <add>, %26, %cst_18 [1] : vector<16x128xf32> to vector<16xf32>
    %28 = vector.shape_cast %27 : vector<16xf32> to vector<16x1xf32>
    %29 = tpu.reciprocal %28 {approx = true} : vector<16x1xf32> -> vector<16x1xf32>
    %30 = vector.broadcast %29 : vector<16x1xf32> to vector<16x128xf32>
    %31 = arith.mulf %26, %30 : vector<16x128xf32>
    %c0_19 = arith.constant 0 : index
    %c0_20 = arith.constant 0 : index
    %32 = vector.load %arg8[%c0_19, %c0_20] : memref<16x128xf32, #tpu.memory_space<vmem>>, vector<16x128xf32>
    tpu.vector_store %arg8[%c0_19, %c0_20], %31 {strides = array<i32>} : memref<16x128xf32, #tpu.memory_space<vmem>>, vector<16x128xf32>,
    return
  }
  func.func @transform_0(%arg0: i32) -> (i32, i32) {
    %c0_i32 = arith.constant 0 : i32
    %c0_i32_0 = arith.constant 0 : i32
    return %arg0, %c0_i32 : i32, i32
  }
  func.func @transform_1(%arg0: i32) -> (i32, i32) {
    %c0_i32 = arith.constant 0 : i32
    %c0_i32_0 = arith.constant 0 : i32
    %c0_i32_1 = arith.constant 0 : i32
    return %c0_i32, %c0_i32_0 : i32, i32
  }
  func.func @transform_2(%arg0: i32) -> (i32, i32) {
    %c0_i32 = arith.constant 0 : i32
    %c0_i32_0 = arith.constant 0 : i32
    %c0_i32_1 = arith.constant 0 : i32
    return %c0_i32, %c0_i32_0 : i32, i32
  }
  func.func @transform_3(%arg0: i32) -> (i32, i32) {
    %c0_i32 = arith.constant 0 : i32
    %c0_i32_0 = arith.constant 0 : i32
    %c0_i32_1 = arith.constant 0 : i32
    return %c0_i32, %c0_i32_0 : i32, i32
  }
  func.func @transform_4(%arg0: i32) -> (i32, i32) {
    %c0_i32 = arith.constant 0 : i32
    %c0_i32_0 = arith.constant 0 : i32
    %c0_i32_1 = arith.constant 0 : i32
    return %c0_i32, %c0_i32_0 : i32, i32
  }
  func.func @transform_5(%arg0: i32) -> (i32, i32) {
    %c0_i32 = arith.constant 0 : i32
    %c0_i32_0 = arith.constant 0 : i32
    %c0_i32_1 = arith.constant 0 : i32
    return %c0_i32, %c0_i32_0 : i32, i32
  }
  func.func @transform_6(%arg0: i32) -> (i32, i32) {
    %c0_i32 = arith.constant 0 : i32
    %c0_i32_0 = arith.constant 0 : i32
    %c0_i32_1 = arith.constant 0 : i32
    return %c0_i32, %c0_i32_0 : i32, i32
  }
  func.func @transform_7(%arg0: i32) -> (i32, i32) {
    %c0_i32 = arith.constant 0 : i32
    %c0_i32_0 = arith.constant 0 : i32
    return %arg0, %c0_i32 : i32, i32
  }
}

</mosaic_0001>

<llo_original>
// kernel: tpu_custom_call.1
$region0: #{tpu_custom_call.1}
  #allocation0 [shape = 'u32[]', space=smem, size = 0x4, offset = 0x4, fixed_abs, tag = 'smem constant byte address 0x4 - core index']
  #allocation1 [shape = 'u32[72,128]{1,0:T(1,128)}', space=vmem, size = 0x9000, scoped, tag = 'internal scratch']
  %s0 = inlined_call_operand.hbm [shape: bf16[16,16], index: 0, kind: input, shape index: {}]
  %s1 = inlined_call_operand.hbm [shape: bf16[16,32], index: 1, kind: input, shape index: {}]
  %s2 = inlined_call_operand.vmem [shape: f32[1,32], index: 2, kind: input, shape index: {}]
  %s3 = inlined_call_operand.hbm [shape: bf16[32,32], index: 3, kind: input, shape index: {}]
  %s4 = inlined_call_operand.vmem [shape: f32[1,32], index: 4, kind: input, shape index: {}]
  %s5 = inlined_call_operand.hbm [shape: bf16[32,128], index: 5, kind: input, shape index: {}]
  %s6 = inlined_call_operand.vmem [shape: f32[1,128], index: 6, kind: input, shape index: {}]
  %s7 = inlined_call_operand.hbm [shape: f32[16,128], index: 7, kind: output, shape index: {}]
  %s8 = sld [smem:[#allocation0]]
  $region54: #{tpu_custom_call.1} parent=0
    _
  %s10 = ssub.s32 1, %s8
  %s11 = scalar_select 0, %s10, %s8
  $region1: #{tpu_custom_call.1} parent=0
    #allocation2 [shape = 'u8[4096]{0}', space=vmem, size = 0x1000, scoped, tag = 'input window, operand 0, single buffered']
    #allocation3 [shape = 's32[1]{0}', space=sflag, size = 0x4, scoped, tag = 'scoped memory for tpu_custom_call.1']
    #allocation4 [shape = 's32[1]{0}', space=sflag, size = 0x4, scoped, tag = 'scoped memory for tpu_custom_call.1']
    #allocation5 [shape = 'u8[4096]{0}', space=vmem, size = 0x1000, scoped, tag = 'input window, operand 1, single buffered']
    #allocation6 [shape = 's32[1]{0}', space=sflag, size = 0x4, scoped, tag = 'scoped memory for tpu_custom_call.1']
    #allocation7 [shape = 'u8[8192]{0}', space=vmem, size = 0x2000, scoped, tag = 'input window, operand 3, single buffered']
    #allocation8 [shape = 'u8[8192]{0}', space=vmem, size = 0x2000, scoped, tag = 'input window, operand 5, single buffered']
    #allocation9 [shape = 's32[1]{0}', space=sflag, size = 0x4, scoped, tag = 'scoped memory for tpu_custom_call.1']
    #allocation10 [shape = 'u8[8192]{0}', space=vmem, size = 0x2000, scoped, tag = 'output window, operand 0, single buffered']
    %12 = vsyncpa [#allocation3], 0
    %13 = vsyncpa [#allocation6], 0
    %14 = vsyncpa [#allocation9], 0
    %15 = vsyncpa [#allocation4], 0
    // Predicated region
    $region2: #{tpu_custom_call.1} parent=1 // pred_check
      _
    $region3: #{tpu_custom_call.1} parent=1 // pred_check_branch
      %17 = sbr.rel (0) target = $region5
    $region4: #{tpu_custom_call.1} parent=1 // pred_region
      %19 = vsyncadd [#allocation3], 0
      %s20 = sshll.u32 %s0, 4
      %s21 = int_to_ptr.hbm [resolvable:$true] %s20
      %s22 = sshll.u32 [#allocation2], 4
      %s23 = int_to_ptr.vmem [resolvable:$true] %s22
      %28 = dma.hbm_to_vmem [thread:$0]  %s21, 128, %s23, [#allocation3], 64, 64, 4
    $region5: #{tpu_custom_call.1} parent=1 // pred_fallthru
      _
    // Predicated region
    $region6: #{tpu_custom_call.1} parent=1 // pred_check
      _
    $region7: #{tpu_custom_call.1} parent=1 // pred_check_branch
      %30 = sbr.rel (0) target = $region9
    $region8: #{tpu_custom_call.1} parent=1 // pred_region
      %32 = vsyncadd [#allocation6], 0
      %s33 = sshll.u32 %s1, 4
      %s34 = int_to_ptr.hbm [resolvable:$true] %s33
      %s35 = sshll.u32 [#allocation5], 4
      %s36 = int_to_ptr.vmem [resolvable:$true] %s35
      %41 = dma.hbm_to_vmem [thread:$0]  %s34, 128, %s36, [#allocation6], 64, 64, 4
    $region9: #{tpu_custom_call.1} parent=1 // pred_fallthru
      _
    // Predicated region
    $region10: #{tpu_custom_call.1} parent=1 // pred_check
      _
    $region11: #{tpu_custom_call.1} parent=1 // pred_check_branch
      %43 = sbr.rel (0) target = $region13
    $region12: #{tpu_custom_call.1} parent=1 // pred_region
      _
    $region13: #{tpu_custom_call.1} parent=1 // pred_fallthru
      _
    // Predicated region
    $region14: #{tpu_custom_call.1} parent=1 // pred_check
      _
    $region15: #{tpu_custom_call.1} parent=1 // pred_check_branch
      %45 = sbr.rel (0) target = $region17
    $region16: #{tpu_custom_call.1} parent=1 // pred_region
      %47 = vsyncadd [#allocation6], 0
      %s48 = sshll.u32 %s3, 4
      %s49 = int_to_ptr.hbm [resolvable:$true] %s48
      %s50 = sshll.u32 [#allocation7], 4
      %s51 = int_to_ptr.vmem [resolvable:$true] %s50
      %56 = dma.hbm_to_vmem [thread:$0]  %s49, 256, %s51, [#allocation6], 64, 64, 4
    $region17: #{tpu_custom_call.1} parent=1 // pred_fallthru
      _
    // Predicated region
    $region18: #{tpu_custom_call.1} parent=1 // pred_check
      _
    $region19: #{tpu_custom_call.1} parent=1 // pred_check_branch
      %58 = sbr.rel (0) target = $region21
    $region20: #{tpu_custom_call.1} parent=1 // pred_region
      _
    $region21: #{tpu_custom_call.1} parent=1 // pred_fallthru
      _
    // Predicated region
    $region22: #{tpu_custom_call.1} parent=1 // pred_check
      _
    $region23: #{tpu_custom_call.1} parent=1 // pred_check_branch
      %60 = sbr.rel (0) target = $region25
    $region24: #{tpu_custom_call.1} parent=1 // pred_region
      %62 = vsyncadd [#allocation9], 0
      %s63 = sshll.u32 %s5, 4
      %s64 = int_to_ptr.hbm [resolvable:$true] %s63
      %s65 = sshll.u32 [#allocation8], 4
      %s66 = int_to_ptr.vmem [resolvable:$true] %s65
      %71 = dma.hbm_to_vmem [thread:$0]  %s64, 256, %s66, [#allocation9], 64, 64, 4
    $region25: #{tpu_custom_call.1} parent=1 // pred_fallthru
      _
    // Predicated region
    $region26: #{tpu_custom_call.1} parent=1 // pred_check
      _
    $region27: #{tpu_custom_call.1} parent=1 // pred_check_branch
      %73 = sbr.rel (0) target = $region29
    $region28: #{tpu_custom_call.1} parent=1 // pred_region
      _
    $region29: #{tpu_custom_call.1} parent=1 // pred_fallthru
      _
    // Predicated region
    $region30: #{tpu_custom_call.1} parent=1 // pred_check
      _
    $region31: #{tpu_custom_call.1} parent=1 // pred_check_branch
      %75 = sbr.rel (0) target = $region33
    $region32: #{tpu_custom_call.1} parent=1 // pred_region
      %77 = dma.done [#allocation3], 128
    $region33: #{tpu_custom_call.1} parent=1 // pred_fallthru
      _
    // Predicated region
    $region34: #{tpu_custom_call.1} parent=1 // pred_check
      _
    $region35: #{tpu_custom_call.1} parent=1 // pred_check_branch
      %79 = sbr.rel (0) target = $region37
    $region36: #{tpu_custom_call.1} parent=1 // pred_region
      %81 = dma.done [#allocation6], 128
    $region37: #{tpu_custom_call.1} parent=1 // pred_fallthru
      _
    // Predicated region
    $region38: #{tpu_custom_call.1} parent=1 // pred_check
      _
    $region39: #{tpu_custom_call.1} parent=1 // pred_check_branch
      %83 = sbr.rel (0) target = $region41
    $region40: #{tpu_custom_call.1} parent=1 // pred_region
      %85 = dma.done [#allocation6], 256
    $region41: #{tpu_custom_call.1} parent=1 // pred_fallthru
      _
    // Predicated region
    $region42: #{tpu_custom_call.1} parent=1 // pred_check
      _
    $region43: #{tpu_custom_call.1} parent=1 // pred_check_branch
      %87 = sbr.rel (0) target = $region45
    $region44: #{tpu_custom_call.1} parent=1 // pred_region
      %89 = dma.done [#allocation9], 256
    $region45: #{tpu_custom_call.1} parent=1 // pred_fallthru
      _
    %v91 = vld [vmem:[#allocation2] sm:$0xf]
    %v92 = vld [vmem:[#allocation2 + $0x4] sm:$0xf]
    %v93 = vld [vmem:[#allocation5] sm:$0xf]
    %v94 = vld [vmem:[#allocation5 + $0x4] sm:$0xf]
    %v95 = vld [vmem:[%s2] sm:$0x1]
    %v97 = vperm.slane %v95, 0
    %v101 = vunpack.c.l.b16 %v91
    %v102 = vunpack.c.l.b16 %v92
    %v103 = vpack.c.b16 %v102, %v101
    %v106 = vunpack.c.l.b16 %v93
    %v107 = vunpack.c.l.b16 %v94
    %v108 = vpack.c.b16 %v107, %v106
    %vm110 = vcmask 130048
    %v112 = vsel %vm110, %v103, 0
    %114 = vmatpush.bf16.msra.mxu0 0
    %115 = vmatpush.bf16.msra.mxu0 0
    %116 = vmatpush.bf16.msra.mxu0 0
    %117 = vmatpush.bf16.msra.mxu0 0
    %118 = vmatpush.bf16.msra.mxu0 0
    %119 = vmatpush.bf16.msra.mxu0 0
    %120 = vmatpush.bf16.msra.mxu0 0
    %121 = vmatpush.bf16.msra.mxu0 %v108
    %122 = vmatmul.bf16.gmra.mxu0 %v112
    %v123 = vpop.f32.mrf.mxu0
    %v124 = vadd.f32 %v97, %v123
    %v125 = vpop.f32.mrf.mxu0
    %v126 = vadd.f32 %v97, %v125
    %127 = vdwg.mxu0
    %v128 = vmax.f32 %v124, 0.0
    %v129 = vmax.f32 %v126, 0.0
    %v130 = vpack.c.bf16 %v129, %v128
    %v131 = vld [vmem:[#allocation7] sm:$0xf]
    %v132 = vld [vmem:[#allocation7 + $0x4] sm:$0xf]
    %v133 = vld [vmem:[#allocation7 + $0x8] sm:$0xf]
    %v134 = vld [vmem:[#allocation7 + $0xc] sm:$0xf]
    %v135 = vld [vmem:[%s4] sm:$0x1]
    %v137 = vperm.slane %v135, 0
    %v143 = vunpack.c.l.b16 %v131
    %v144 = vunpack.c.l.b16 %v132
    %v145 = vunpack.c.l.b16 %v133
    %v146 = vunpack.c.l.b16 %v134
    %v147 = vpack.c.b16 %v144, %v143
    %v148 = vpack.c.b16 %v146, %v145
    %vm151 = vcmask 261120
    %v153 = vsel %vm151, %v130, 0
    %155 = vmatpush.bf16.msra.mxu0 0
    %156 = vmatpush.bf16.msra.mxu0 0
    %157 = vmatpush.bf16.msra.mxu0 0
    %158 = vmatpush.bf16.msra.mxu0 0
    %159 = vmatpush.bf16.msra.mxu0 0
    %160 = vmatpush.bf16.msra.mxu0 0
    %161 = vmatpush.bf16.msra.mxu0 %v148
    %162 = vmatpush.bf16.msra.mxu0 %v147
    %163 = vmatmul.bf16.gmra.mxu0 %v153
    %v164 = vpop.f32.mrf.mxu0
    %v165 = vadd.f32 %v137, %v164
    %v166 = vpop.f32.mrf.mxu0
    %v167 = vadd.f32 %v137, %v166
    %168 = vdwg.mxu0
    %v169 = vmax.f32 %v165, 0.0
    %v170 = vmax.f32 %v167, 0.0
    %v171 = vpack.c.bf16 %v170, %v169
    %v172 = vld [vmem:[#allocation8] sm:$0xf]
    %v173 = vld [vmem:[#allocation8 + $0x4] sm:$0xf]
    %v174 = vld [vmem:[#allocation8 + $0x8] sm:$0xf]
    %v175 = vld [vmem:[#allocation8 + $0xc] sm:$0xf]
    %v176 = vld [vmem:[%s6] sm:$0x1]
    %v178 = vperm.slane %v176, 0
    %v184 = vunpack.c.l.b16 %v172
    %v185 = vunpack.c.l.b16 %v173
    %v186 = vunpack.c.l.b16 %v174
    %v187 = vunpack.c.l.b16 %v175
    %v188 = vpack.c.b16 %v185, %v184
    %v189 = vpack.c.b16 %v187, %v186
    %v193 = vsel %vm151, %v171, 0
    %195 = vmatpush.bf16.msra.mxu0 0
    %196 = vmatpush.bf16.msra.mxu0 0
    %197 = vmatpush.bf16.msra.mxu0 0
    %198 = vmatpush.bf16.msra.mxu0 0
    %199 = vmatpush.bf16.msra.mxu0 0
    %200 = vmatpush.bf16.msra.mxu0 0
    %201 = vmatpush.bf16.msra.mxu0 %v189
    %202 = vmatpush.bf16.msra.mxu0 %v188
    %203 = vmatmul.bf16.gmra.mxu0 %v193
    %v204 = vpop.f32.mrf.mxu0
    %v205 = vadd.f32 %v178, %v204
    %v206 = vpop.f32.mrf.mxu0
    %v207 = vadd.f32 %v178, %v206
    %208 = vdwg.mxu0
    %209 = vmax.xlane.f32.xlu0 %v205
    %v210 = vpop.xlane.xlu0 %209
    %211 = vmax.xlane.f32.xlu0 %v207
    %v212 = vpop.xlane.xlu0 %211
    %v213 = vsub.f32 %v205, %v210
    %v214 = vsub.f32 %v207, %v212
    %v215 = vmul.f32 %v213, 1.442695
    %v216 = vpow.pop %v215
    %v217 = vmul.f32 %v214, 1.442695
    %v218 = vpow.pop %v217
    %219 = vadd.xlane.f32.xlu0 %v216
    %v220 = vpop.xlane.xlu0 %219
    %221 = vadd.xlane.f32.xlu0 %v218
    %v222 = vpop.xlane.xlu0 %221
    %v223 = vrcp.pop %v220
    %v224 = vrcp.pop %v222
    %v225 = vmul.f32 %v216, %v223
    %v226 = vmul.f32 %v218, %v224
    %227 = vst [vmem:[#allocation10] sm:$0xff] %v225
    %228 = vst [vmem:[#allocation10 + $0x8] sm:$0xff] %v226
    // Predicated region
    $region46: #{tpu_custom_call.1} parent=1 // pred_check
      _
    $region47: #{tpu_custom_call.1} parent=1 // pred_check_branch
      %230 = sbr.rel (0) target = $region49
    $region48: #{tpu_custom_call.1} parent=1 // pred_region
      %232 = vsyncadd [#allocation4], 0
      %s233 = sshll.u32 [#allocation10], 4
      %s234 = int_to_ptr.vmem [resolvable:$true] %s233
      %s235 = sshll.u32 %s7, 4
      %s236 = int_to_ptr.hbm [resolvable:$true] %s235
      %241 = dma.vmem_to_hbm [thread:$0]  %s234, 256, %s236, [#allocation4], 128, 128, 8
    $region49: #{tpu_custom_call.1} parent=1 // pred_fallthru
      _
    // Predicated region
    $region50: #{tpu_custom_call.1} parent=1 // pred_check
      _
    $region51: #{tpu_custom_call.1} parent=1 // pred_check_branch
      %243 = sbr.rel (0) target = $region53
    $region52: #{tpu_custom_call.1} parent=1 // pred_region
      %245 = dma.done [#allocation4], 256
    $region53: #{tpu_custom_call.1} parent=1 // pred_fallthru
      _
    %246 = vsyncpa [#allocation3], 1
    %247 = vsyncpa [#allocation6], 1
    %248 = vsyncpa [#allocation9], 1
    %249 = vsyncpa [#allocation4], 1

</llo_original>
